<compile_context>
chip_gen: v6e
topology: v6e:2x2x1
jax: 0.10.0
libtpu: 0.0.40
codegen_flags: <defaults>
</compile_context>

<pallas_src>
import jax
import jax.numpy as jnp
from jax.experimental import pallas as pl
from jax.experimental.pallas import tpu as pltpu


def _round_up(x, m):
    return ((x + m - 1) // m) * m


# ---------------------------------------------------------------------------
# Kernel: one (batch, output-row-tile) grid step.
# ---------------------------------------------------------------------------
def _cff_kernel(xlr_ref, xhr_ref, wlr_ref, whr_ref, bias_ref, out_ref):
    """
    xlr_ref : (1, TH, W, Kp)   bf16  im2col'ed upsampled+padded lowres taps
    xhr_ref : (1, TH, W, Cp)   bf16  highres activations (channel-padded)
    wlr_ref : (Kp, 128)        bf16  BN-folded dilated 3x3 conv weights
    whr_ref : (Cp, 128)        bf16  BN-folded 1x1 projection weights
    bias_ref: (1, 128)         f32   combined folded BN bias (lr + hr)
    out_ref : (1, TH, W, 128)        ReLU(lr + hr) output tile (lane-dense)
    """
    th, w, cout = out_ref.shape[1], out_ref.shape[2], out_ref.shape[3]
    klr = xlr_ref.shape[-1]
    khr = xhr_ref.shape[-1]

    # Flatten to (M, K) so each branch is a single large-M 2-D MXU contraction.
    xlr = xlr_ref[0].reshape(th * w, klr)
    xhr = xhr_ref[0].reshape(th * w, khr)

    acc = jnp.dot(xlr, wlr_ref[...], preferred_element_type=jnp.float32)
    acc = acc + jnp.dot(xhr, whr_ref[...], preferred_element_type=jnp.float32)

    # Folded-BN bias + ReLU epilogue in f32; single lane-dense store.
    y = jnp.maximum(acc + bias_ref[...], 0.0)
    out_ref[0] = y.reshape(th, w, cout).astype(out_ref.dtype)


# ---------------------------------------------------------------------------
# Generation-aware VMEM budgeting / tile selection
# ---------------------------------------------------------------------------
def _vmem_budgets():
    """(tile working-set budget, vmem_limit_bytes) derived from chip VMEM."""
    cap = None
    try:
        cap = int(pltpu.get_tpu_info().vmem_capacity_bytes)
    except Exception:
        cap = None
    if cap is None:
        cap = 64 * 1024 * 1024                       # conservative (v7x-sized)
    if cap >= 100 * 1024 * 1024:                     # v5e / v6e: 128 MiB VMEM
        return 48 * 1024 * 1024, 96 * 1024 * 1024
    return 20 * 1024 * 1024, 44 * 1024 * 1024        # v7x: 64 MiB VMEM


def _pick_row_tile(h_out, w_out, klr_p, chr_p, c_out, n_batch, out_bytes,
                   budget_bytes):
    """Largest divisor of h_out whose double-buffered working set fits budget,
    preferring tilings that give an even number (>= 2) of grid steps so both
    v7x TensorCores stay busy."""
    def need(th):
        return (2 * th * w_out * (klr_p + chr_p) * 2      # input blocks, bf16, x2 bufs
                + 2 * th * w_out * c_out * out_bytes      # output block, x2 bufs
                + 2 * (klr_p + chr_p) * c_out * 2         # weight blocks, x2 bufs
                + 2 * c_out * 4)                          # bias
    fits = [th for th in range(1, h_out + 1)
            if h_out % th == 0 and need(th) <= budget_bytes]
    if not fits:
        fits = [1]
    even = [th for th in fits
            if (n_batch * (h_out // th)) % 2 == 0
            and n_batch * (h_out // th) >= 2]
    return max(even) if even else max(fits)


# ---------------------------------------------------------------------------
# Wrapper
# ---------------------------------------------------------------------------
def cascade_feature_fusion(
        lowres_nchw, highres_nchw, highres_size_hw,
        w_lr_oihw, gamma_lr, beta_lr, mean_lr, var_lr,
        w_hr_oihw, gamma_hr, beta_hr, mean_hr, var_hr,
        *, eps=1e-5, row_tile=None, compute_dtype=jnp.bfloat16,
        nchw_output=True):
    """Eval-mode CascadeFeatureFusion forward. NCHW in / NCHW out (default)."""
    n, c_lr, h_low, w_low = lowres_nchw.shape
    n2, c_hr, h_hr_in, w_hr_in = highres_nchw.shape
    h_hr, w_hr = highres_size_hw
    assert n == n2
    assert (h_hr, w_hr) == (h_hr_in, w_hr_in), \
        "lr and hr branches must match spatially"

    cout, c_lr_w, ksize, ksize_w = w_lr_oihw.shape
    assert c_lr_w == c_lr and ksize == ksize_w == 3
    cout_hr, c_hr_w, k1, k1w = w_hr_oihw.shape
    assert cout_hr == cout and c_hr_w == c_hr and k1 == k1w == 1
    assert cout == 128, "CascadeFeatureFusion fixes out_channels=128"

    dilation, pad = 2, 2                   # ConvBN(kernel=3, padding=2, dilation=2)

    k_lr = ksize * ksize * c_lr
    klr_p = _round_up(k_lr, 128)           # pad contraction dims to full lanes
    chr_p = _round_up(c_hr, 128)

    out_dtype = highres_nchw.dtype
    out_bytes = jnp.dtype(out_dtype).itemsize

    budget_bytes, vmem_limit = _vmem_budgets()
    if row_tile is None:
        row_tile = _pick_row_tile(h_hr, w_hr, klr_p, chr_p, cout, n,
                                  out_bytes, budget_bytes)
    assert h_hr % row_tile == 0, "row_tile must divide the output height"
    n_tiles = h_hr // row_tile

    # ---- fold eval-mode BatchNorm into the conv weights and a single bias ----
    inv_lr = jax.lax.rsqrt(var_lr.astype(jnp.float32) + eps)
    scale_lr = gamma_lr.astype(jnp.float32) * inv_lr
    bias_lr = beta_lr.astype(jnp.float32) - mean_lr.astype(jnp.float32) * scale_lr
    inv_hr = jax.lax.rsqrt(var_hr.astype(jnp.float32) + eps)
    scale_hr = gamma_hr.astype(jnp.float32) * inv_hr
    bias_hr = beta_hr.astype(jnp.float32) - mean_hr.astype(jnp.float32) * scale_hr

    w_lr_mat = (jnp.transpose(w_lr_oihw, (2, 3, 1, 0)).astype(jnp.float32)
                * scale_lr[None, None, None, :]).reshape(k_lr, cout)
    if klr_p > k_lr:
        w_lr_mat = jnp.pad(w_lr_mat, ((0, klr_p - k_lr), (0, 0)))
    w_lr_mat = w_lr_mat.astype(compute_dtype)                 # (Kp, 128)

    w_hr_mat = (w_hr_oihw[:, :, 0, 0].T.astype(jnp.float32) * scale_hr[None, :])
    if chr_p > c_hr:
        w_hr_mat = jnp.pad(w_hr_mat, ((0, chr_p - c_hr), (0, 0)))
    w_hr_mat = w_hr_mat.astype(compute_dtype)                 # (Cp, 128)

    bias = (bias_lr + bias_hr).reshape(1, cout).astype(jnp.float32)

    # ---- ONE fused gather: nearest upsample + zero pad + dilated im2col ------
    # PyTorch F.interpolate(mode='nearest'): src = floor(dst * in / out).
    off = jnp.arange(ksize) * dilation - pad                  # tap offsets [-2,0,2]
    row_tap = jnp.arange(h_hr)[:, None] + off[None, :]        # (H, 3)
    col_tap = jnp.arange(w_hr)[:, None] + off[None, :]        # (W, 3)
    row_valid = (row_tap >= 0) & (row_tap < h_hr)
    col_valid = (col_tap >= 0) & (col_tap < w_hr)
    row_src = (jnp.clip(row_tap, 0, h_hr - 1) * h_low) // h_hr
    col_src = (jnp.clip(col_tap, 0, w_hr - 1) * w_low) // w_hr

    x_low = jnp.transpose(lowres_nchw, (0, 2, 3, 1))          # (N, h_low, w_low, C_lr)
    g = x_low[:, row_src, :, :]                               # (N, H, 3, w_low, C_lr)
    g = g[:, :, :, col_src, :]                                # (N, H, 3, W, 3, C_lr)
    mask = (row_valid[None, :, :, None, None, None]
            & col_valid[None, None, None, :, :, None])
    g = jnp.where(mask, g, 0)
    # (kh, kw, cin) ordering matches the (KH, KW, Cin, Cout) weight reshape.
    g = jnp.transpose(g, (0, 1, 3, 2, 4, 5)).reshape(n, h_hr, w_hr, k_lr)
    if klr_p > k_lr:
        g = jnp.pad(g, ((0, 0), (0, 0), (0, 0), (0, klr_p - k_lr)))
    x_lr_col = g.astype(compute_dtype)                        # (N, H, W, Kp)

    x_hr = jnp.transpose(highres_nchw, (0, 2, 3, 1))          # (N, H, W, C_hr)
    if chr_p > c_hr:
        x_hr = jnp.pad(x_hr, ((0, 0), (0, 0), (0, 0), (0, chr_p - c_hr)))
    x_hr = x_hr.astype(compute_dtype)                         # (N, H, W, Cp)

    out_nhwc = pl.pallas_call(
        _cff_kernel,
        out_shape=jax.ShapeDtypeStruct((n, h_hr, w_hr, cout), out_dtype),
        grid_spec=pltpu.PrefetchScalarGridSpec(
            num_scalar_prefetch=0,
            grid=(n, n_tiles),
            in_specs=[
                pl.BlockSpec((1, row_tile, w_hr, klr_p), lambda b, i: (b, i, 0, 0)),
                pl.BlockSpec((1, row_tile, w_hr, chr_p), lambda b, i: (b, i, 0, 0)),
                pl.BlockSpec((klr_p, cout), lambda b, i: (0, 0)),
                pl.BlockSpec((chr_p, cout), lambda b, i: (0, 0)),
                pl.BlockSpec((1, cout), lambda b, i: (0, 0)),
            ],
            out_specs=pl.BlockSpec((1, row_tile, w_hr, cout),
                                   lambda b, i: (b, i, 0, 0)),
        ),
        compiler_params=pltpu.CompilerParams(
            dimension_semantics=("parallel", "parallel"),
            vmem_limit_bytes=vmem_limit),
    )(x_lr_col, x_hr, w_lr_mat, w_hr_mat, bias)

    if nchw_output:
        # TODO(synk): keep NHWC through the surrounding graph (nchw_output=False)
        # to drop this extra full-tensor HBM pass when the consumer allows it.
        return jnp.transpose(out_nhwc, (0, 3, 1, 2))
    return out_nhwc


# ---------------------------------------------------------------------------
# Pure-JAX f32 reference (eval-mode forward)
# ---------------------------------------------------------------------------
def _reference(lowres_nchw, highres_nchw, highres_size_hw,
               w_lr_oihw, gamma_lr, beta_lr, mean_lr, var_lr,
               w_hr_oihw, gamma_hr, beta_hr, mean_hr, var_hr, eps=1e-5):
    h_hr, w_hr = highres_size_hw
    _, _, h_low, w_low = lowres_nchw.shape
    rows = (jnp.arange(h_hr) * h_low) // h_hr
    cols = (jnp.arange(w_hr) * w_low) // w_hr
    up = lowres_nchw[:, :, rows, :][:, :, :, cols]            # nearest upsample

    def conv_bn(x, w, gamma, beta, mean, var, p, dil):
        y = jax.lax.conv_general_dilated(
            x.astype(jnp.float32), w.astype(jnp.float32),
            window_strides=(1, 1), padding=((p, p), (p, p)),
            rhs_dilation=(dil, dil),
            dimension_numbers=("NCHW", "OIHW", "NCHW"))
        inv = jax.lax.rsqrt(var.astype(jnp.float32) + eps)
        return ((y - mean[None, :, None, None]) * inv[None, :, None, None]
                * gamma[None, :, None, None] + beta[None, :, None, None])

    lr = conv_bn(up, w_lr_oihw, gamma_lr, beta_lr, mean_lr, var_lr, 2, 2)
    hr = conv_bn(highres_nchw, w_hr_oihw, gamma_hr, beta_hr, mean_hr, var_hr, 0, 1)
    return jnp.maximum(lr + hr, 0.0)


# ---------------------------------------------------------------------------
# Demo / self-test
# ---------------------------------------------------------------------------
if __name__ == "__main__":
    key = jax.random.PRNGKey(0)
    keys = jax.random.split(key, 12)

    N = 2
    C_LR, H_LOW, W_LOW = 8, 8, 8         # lowres branch input
    C_HR, H_HR, W_HR = 4, 16, 16         # highres branch input (== highres_size_hw)
    COUT = 128                           # fixed by CascadeFeatureFusion

    lowres = jax.random.normal(keys[0], (N, C_LR, H_LOW, W_LOW), jnp.float32)
    highres = jax.random.normal(keys[1], (N, C_HR, H_HR, W_HR), jnp.float32)

    w_lr = 0.1 * jax.random.normal(keys[2], (COUT, C_LR, 3, 3), jnp.float32)
    g_lr = 1.0 + 0.1 * jax.random.normal(keys[3], (COUT,), jnp.float32)
    b_lr = 0.1 * jax.random.normal(keys[4], (COUT,), jnp.float32)
    m_lr = 0.1 * jax.random.normal(keys[5], (COUT,), jnp.float32)
    v_lr = jnp.abs(jax.random.normal(keys[6], (COUT,), jnp.float32)) + 0.5

    w_hr = 0.1 * jax.random.normal(keys[7], (COUT, C_HR, 1, 1), jnp.float32)
    g_hr = 1.0 + 0.1 * jax.random.normal(keys[8], (COUT,), jnp.float32)
    b_hr = 0.1 * jax.random.normal(keys[9], (COUT,), jnp.float32)
    m_hr = 0.1 * jax.random.normal(keys[10], (COUT,), jnp.float32)
    v_hr = jnp.abs(jax.random.normal(keys[11], (COUT,), jnp.float32)) + 0.5

    args = (lowres, highres, (H_HR, W_HR),
            w_lr, g_lr, b_lr, m_lr, v_lr,
            w_hr, g_hr, b_hr, m_hr, v_hr)

    out = jax.block_until_ready(cascade_feature_fusion(*args))

    ref = _reference(*args)
    assert out.shape == (N, COUT, H_HR, W_HR), out.shape
    # bf16 matmul operands vs full-f32 reference -> modest tolerance.
    max_err = float(jnp.max(jnp.abs(out - ref)))
    assert jnp.allclose(out, ref, atol=5e-2, rtol=5e-2), max_err

    print("KERNEL_OK")
</pallas_src>

<mosaic_0001>
module attributes {stable_mosaic.version = 11 : i64} {
  func.func @_cff_kernel(%arg0: i32, %arg1: i32, %arg2: memref<1x16x16x128xbf16, #tpu.memory_space<vmem>>, %arg3: memref<1x16x16x128xbf16, #tpu.memory_space<vmem>>, %arg4: memref<128x128xbf16, #tpu.memory_space<vmem>>, %arg5: memref<128x128xbf16, #tpu.memory_space<vmem>>, %arg6: memref<1x128xf32, #tpu.memory_space<vmem>>, %arg7: memref<1x16x16x128xf32, #tpu.memory_space<vmem>>) attributes {dimension_semantics = [#tpu.dimension_semantics<parallel>, #tpu.dimension_semantics<parallel>], iteration_bounds = array<i64: 2, 1>, scalar_prefetch = 0 : i64, scratch_operands = 0 : i64, tpu.core_type = #tpu.core_type<tc>, window_params = [{transform_indices = @transform_0, window_bounds = array<i64: 1, 16, 16, 128>}, {transform_indices = @transform_1, window_bounds = array<i64: 1, 16, 16, 128>}, {pipeline_mode = #tpu.pipeline_mode<synchronous>, transform_indices = @transform_2, window_bounds = array<i64: 128, 128>}, {pipeline_mode = #tpu.pipeline_mode<synchronous>, transform_indices = @transform_3, window_bounds = array<i64: 128, 128>}, {pipeline_mode = #tpu.pipeline_mode<synchronous>, transform_indices = @transform_4, window_bounds = array<i64: 1, 128>}, {transform_indices = @transform_5, window_bounds = array<i64: 1, 16, 16, 128>}]} {
    %c0 = arith.constant 0 : index
    %c0_0 = arith.constant 0 : index
    %c0_1 = arith.constant 0 : index
    %c0_2 = arith.constant 0 : index
    %0 = vector.load %arg2[%c0, %c0_0, %c0_1, %c0_2] : memref<1x16x16x128xbf16, #tpu.memory_space<vmem>>, vector<1x16x16x128xbf16>
    %1 = vector.shape_cast %0 : vector<1x16x16x128xbf16> to vector<16x16x128xbf16>
    %2 = vector.shape_cast %1 : vector<16x16x128xbf16> to vector<256x128xbf16>
    %c0_3 = arith.constant 0 : index
    %c0_4 = arith.constant 0 : index
    %c0_5 = arith.constant 0 : index
    %c0_6 = arith.constant 0 : index
    %3 = vector.load %arg3[%c0_3, %c0_4, %c0_5, %c0_6] : memref<1x16x16x128xbf16, #tpu.memory_space<vmem>>, vector<1x16x16x128xbf16>
    %4 = vector.shape_cast %3 : vector<1x16x16x128xbf16> to vector<16x16x128xbf16>
    %5 = vector.shape_cast %4 : vector<16x16x128xbf16> to vector<256x128xbf16>
    %c0_7 = arith.constant 0 : index
    %c0_8 = arith.constant 0 : index
    %6 = vector.load %arg4[%c0_7, %c0_8] : memref<128x128xbf16, #tpu.memory_space<vmem>>, vector<128x128xbf16>
    %cst = arith.constant dense<0.000000e+00> : vector<256x128xf32>
    %7 = tpu.matmul %2, %6, %cst {dimension_numbers = #tpu.dot_dimension_numbers<[1], [0], [0], [1], [0, 0, 1, 1], [], []>} : vector<256x128xbf16>, vector<128x128xbf16>, vector<256x128xf32> -> vector<256x128xf32>
    %c0_9 = arith.constant 0 : index
    %c0_10 = arith.constant 0 : index
    %8 = vector.load %arg5[%c0_9, %c0_10] : memref<128x128xbf16, #tpu.memory_space<vmem>>, vector<128x128xbf16>
    %cst_11 = arith.constant dense<0.000000e+00> : vector<256x128xf32>
    %9 = tpu.matmul %5, %8, %cst_11 {dimension_numbers = #tpu.dot_dimension_numbers<[1], [0], [0], [1], [0, 0, 1, 1], [], []>} : vector<256x128xbf16>, vector<128x128xbf16>, vector<256x128xf32> -> vector<256x128xf32>
    %10 = arith.addf %7, %9 : vector<256x128xf32>
    %c0_12 = arith.constant 0 : index
    %c0_13 = arith.constant 0 : index
    %11 = vector.load %arg6[%c0_12, %c0_13] : memref<1x128xf32, #tpu.memory_space<vmem>>, vector<1x128xf32>
    %12 = vector.broadcast %11 : vector<1x128xf32> to vector<256x128xf32>
    %13 = arith.addf %10, %12 : vector<256x128xf32>
    %cst_14 = arith.constant 0.000000e+00 : f32
    %14 = vector.broadcast %cst_14 : f32 to vector<256x128xf32>
    %15 = arith.maximumf %13, %14 : vector<256x128xf32>
    %16 = vector.shape_cast %15 : vector<256x128xf32> to vector<16x16x128xf32>
    %c0_15 = arith.constant 0 : index
    %c0_16 = arith.constant 0 : index
    %c0_17 = arith.constant 0 : index
    %c0_18 = arith.constant 0 : index
    %17 = vector.load %arg7[%c0_15, %c0_16, %c0_17, %c0_18] : memref<1x16x16x128xf32, #tpu.memory_space<vmem>>, vector<1x16x16x128xf32>
    %18 = vector.shape_cast %17 : vector<1x16x16x128xf32> to vector<16x16x128xf32>
    %19 = vector.shape_cast %16 : vector<16x16x128xf32> to vector<1x16x16x128xf32>
    tpu.vector_store %arg7[%c0_15, %c0_16, %c0_17, %c0_18], %19 {strides = array<i32>} : memref<1x16x16x128xf32, #tpu.memory_space<vmem>>, vector<1x16x16x128xf32>,
    return
  }
  func.func @transform_0(%arg0: i32, %arg1: i32) -> (i32, i32, i32, i32) {
    %c0_i32 = arith.constant 0 : i32
    %c0_i32_0 = arith.constant 0 : i32
    %c0_i32_1 = arith.constant 0 : i32
    return %arg0, %arg1, %c0_i32, %c0_i32_0 : i32, i32, i32, i32
  }
  func.func @transform_1(%arg0: i32, %arg1: i32) -> (i32, i32, i32, i32) {
    %c0_i32 = arith.constant 0 : i32
    %c0_i32_0 = arith.constant 0 : i32
    %c0_i32_1 = arith.constant 0 : i32
    return %arg0, %arg1, %c0_i32, %c0_i32_0 : i32, i32, i32, i32
  }
  func.func @transform_2(%arg0: i32, %arg1: i32) -> (i32, i32) {
    %c0_i32 = arith.constant 0 : i32
    %c0_i32_0 = arith.constant 0 : i32
    %c0_i32_1 = arith.constant 0 : i32
    return %c0_i32, %c0_i32_0 : i32, i32
  }
  func.func @transform_3(%arg0: i32, %arg1: i32) -> (i32, i32) {
    %c0_i32 = arith.constant 0 : i32
    %c0_i32_0 = arith.constant 0 : i32
    %c0_i32_1 = arith.constant 0 : i32
    return %c0_i32, %c0_i32_0 : i32, i32
  }
  func.func @transform_4(%arg0: i32, %arg1: i32) -> (i32, i32) {
    %c0_i32 = arith.constant 0 : i32
    %c0_i32_0 = arith.constant 0 : i32
    %c0_i32_1 = arith.constant 0 : i32
    return %c0_i32, %c0_i32_0 : i32, i32
  }
  func.func @transform_5(%arg0: i32, %arg1: i32) -> (i32, i32, i32, i32) {
    %c0_i32 = arith.constant 0 : i32
    %c0_i32_0 = arith.constant 0 : i32
    %c0_i32_1 = arith.constant 0 : i32
    return %arg0, %arg1, %c0_i32, %c0_i32_0 : i32, i32, i32, i32
  }
}

</mosaic_0001>

<llo_original>
// kernel: tpu_custom_call.1
$region0: #{tpu_custom_call.1}
  #allocation0 [shape = 'u32[]', space=smem, size = 0x4, offset = 0x4, fixed_abs, tag = 'smem constant byte address 0x4 - core index']
  #allocation1 [shape = 'u32[144,128]{1,0:T(1,128)}', space=vmem, size = 0x12000, scoped, tag = 'internal scratch']
  %s0 = inlined_call_operand.hbm [shape: bf16[2,16,16,128], index: 0, kind: input, shape index: {}]
  %s1 = inlined_call_operand.hbm [shape: bf16[2,16,16,128], index: 1, kind: input, shape index: {}]
  %s2 = inlined_call_operand.hbm [shape: bf16[128,128], index: 2, kind: input, shape index: {}]
  %s3 = inlined_call_operand.hbm [shape: bf16[128,128], index: 3, kind: input, shape index: {}]
  %s4 = inlined_call_operand.vmem [shape: f32[1,128], index: 4, kind: input, shape index: {}]
  %s5 = inlined_call_operand.hbm [shape: f32[2,16,16,128], index: 5, kind: output, shape index: {}]
  %s6 = sld [smem:[#allocation0]]
  $region69: #{tpu_custom_call.1} parent=0
    _
  %s8 = ssub.s32 1, %s6
  %s9 = scalar_select 0, %s8, %s6
  $region1: #{tpu_custom_call.1} parent=0
    #allocation2 [shape = 'u8[131072]{0}', space=vmem, size = 0x20000, scoped, tag = 'input window, operand 0']
    #allocation3 [shape = 's32[2]{0}', space=sflag, size = 0x8, scoped, tag = 'scoped memory for tpu_custom_call.1']
    #allocation4 [shape = 's32[2]{0}', space=sflag, size = 0x8, scoped, tag = 'scoped memory for tpu_custom_call.1']
    #allocation5 [shape = 'u8[131072]{0}', space=vmem, size = 0x20000, scoped, tag = 'input window, operand 1']
    #allocation6 [shape = 's32[2]{0}', space=sflag, size = 0x8, scoped, tag = 'scoped memory for tpu_custom_call.1']
    #allocation7 [shape = 'u8[32768]{0}', space=vmem, size = 0x8000, scoped, tag = 'input window, operand 2, single buffered']
    #allocation8 [shape = 'u8[32768]{0}', space=vmem, size = 0x8000, scoped, tag = 'input window, operand 3, single buffered']
    #allocation9 [shape = 's32[1]{0}', space=sflag, size = 0x4, scoped, tag = 'scoped memory for tpu_custom_call.1']
    #allocation10 [shape = 'u8[262144]{0}', space=vmem, size = 0x40000, scoped, tag = 'output window, operand 0']
    %10 = vsyncpa [#allocation3], 0
    %s11 = scalar_lea.sflag [#allocation3], 1
    %12 = vsyncpa %s11, 0
    %13 = vsyncpa [#allocation6], 0
    %s14 = scalar_lea.sflag [#allocation6], 1
    %15 = vsyncpa %s14, 0
    %16 = vsyncpa [#allocation9], 0
    %17 = vsyncpa [#allocation4], 0
    %s18 = scalar_lea.sflag [#allocation4], 1
    %19 = vsyncpa %s18, 0
    loop: start=0, step=1, limit=4
    $region2: #{tpu_custom_call.1} parent=1 // loop_pre_header
      _
    $region3: #{tpu_custom_call.1} parent=1 // loop_header
      %s21 = sphi 0, %s25
      %p22 = scmp.ge.s32.totalorder %s21, 4
      %s28 = sphi 0, %s40
      %s29 = sphi 0, %s36
      %s30 = sphi 0, %s28
      %s31 = sphi 0, %s29
      %s32 = sphi 0, %s30
      %s33 = sphi 0, %s31
      %s45 = sphi 0, %s47
      %s48 = sphi 0, %s45
      %s49 = sphi 0, %s48
      %s65 = sphi 0, %s49
      %s73 = sphi 0, %s75
      %s76 = sphi 0, %s73
      %s77 = sphi 0, %s76
      %s93 = sphi 0, %s77
      %s97 = sphi 0, %s97
      %s99 = sphi 0, %s97
      %s100 = sphi 0, %s99
      %s114 = sphi 0, %s100
      %s118 = sphi 0, %s118
      %s120 = sphi 0, %s118
      %s121 = sphi 0, %s120
      %s135 = sphi 0, %s121
      %s139 = sphi 0, %s139
      %s141 = sphi 0, %s139
      %s142 = sphi 0, %s141
      %s156 = sphi 0, %s142
      %s164 = sphi 0, %s166
      %s167 = sphi 0, %s164
      %s168 = sphi 0, %s167
      %s184 = sphi 0, %s168
    $region4: #{tpu_custom_call.1} parent=1 // loop_header_branch
      %24 = sbr.rel (%p22) target = $region8
    $region5: #{tpu_custom_call.1} parent=1 // loop_body
      %s26 = ssub.s32 %s21, 1
      %s27 = ssub.s32 %s21, 2
      %s34 = sadd.s32 1, %s29
      %p35 = scmp.ge.s32.totalorder %s34, 1
      %s36 = scalar_select %p35, 0, %s34
      %s37 = sadd.s32 1, %s28
      %s38 = scalar_select %p35, %s37, %s28
      %p39 = scmp.ge.s32.totalorder %s38, 2
      %s40 = scalar_select %p39, 0, %s38
      %s41 = ssub.s32 %s28, %s40
      %s42 = ssub.s32 %s29, %s36
      %s43 = sor.u32 %s41, %s42
      %p44 = scmp.eq.s32.totalorder %s43, 0
      %s46 = sadd.s32 %s45, 1
      %s47 = scalar_select %p44, %s45, %s46
      %p50 = pneg %p44
      %p51 = scmp.eq.s32.totalorder %s21, 1
      %p52 = por %p50, %p51
      %p53 = scmp.ne.s32.totalorder %s45, %s48
      %p54 = scmp.eq.s32.totalorder %s21, 0
      %p55 = por %p53, %p54
      %p56 = scmp.ne.s32.totalorder %s45, %s48
      %p57 = scmp.eq.s32.totalorder %s26, 1
      %p58 = por %p56, %p57
      %p59 = scmp.ne.s32.totalorder %s48, %s49
      %p60 = scmp.eq.s32.totalorder %s26, 0
      %p61 = por %p59, %p60
      %p62 = scmp.ne.s32.totalorder %s48, %s49
      %p63 = scmp.eq.s32.totalorder %s27, 1
      %p64 = por %p62, %p63
      %p66 = scmp.ne.s32.totalorder %s49, %s65
      %p67 = scmp.eq.s32.totalorder %s27, 0
      %p68 = por %p66, %p67
      %s69 = ssub.s32 %s28, %s40
      %s70 = ssub.s32 %s29, %s36
      %s71 = sor.u32 %s69, %s70
      %p72 = scmp.eq.s32.totalorder %s71, 0
      %s74 = sadd.s32 %s73, 1
      %s75 = scalar_select %p72, %s73, %s74
      %p78 = pneg %p72
      %p79 = scmp.eq.s32.totalorder %s21, 1
      %p80 = por %p78, %p79
      %p81 = scmp.ne.s32.totalorder %s73, %s76
      %p82 = scmp.eq.s32.totalorder %s21, 0
      %p83 = por %p81, %p82
      %p84 = scmp.ne.s32.totalorder %s73, %s76
      %p85 = scmp.eq.s32.totalorder %s26, 1
      %p86 = por %p84, %p85
      %p87 = scmp.ne.s32.totalorder %s76, %s77
      %p88 = scmp.eq.s32.totalorder %s26, 0
      %p89 = por %p87, %p88
      %p90 = scmp.ne.s32.totalorder %s76, %s77
      %p91 = scmp.eq.s32.totalorder %s27, 1
      %p92 = por %p90, %p91
      %p94 = scmp.ne.s32.totalorder %s77, %s93
      %p95 = scmp.eq.s32.totalorder %s27, 0
      %p96 = por %p94, %p95
      %s98 = sadd.s32 %s97, 1
      %p101 = scmp.eq.s32.totalorder %s21, 1
      %p102 = scmp.ne.s32.totalorder %s97, %s99
      %p103 = scmp.eq.s32.totalorder %s21, 0
      %p104 = por %p102, %p103
      %p105 = scmp.ne.s32.totalorder %s97, %s99
      %p106 = scmp.eq.s32.totalorder %s26, 1
      %p107 = por %p105, %p106
      %p108 = scmp.ne.s32.totalorder %s99, %s100
      %p109 = scmp.eq.s32.totalorder %s26, 0
      %p110 = por %p108, %p109
      %p111 = scmp.ne.s32.totalorder %s99, %s100
      %p112 = scmp.eq.s32.totalorder %s27, 1
      %p113 = por %p111, %p112
      %p115 = scmp.ne.s32.totalorder %s100, %s114
      %p116 = scmp.eq.s32.totalorder %s27, 0
      %p117 = por %p115, %p116
      %s119 = sadd.s32 %s118, 1
      %p122 = scmp.eq.s32.totalorder %s21, 1
      %p123 = scmp.ne.s32.totalorder %s118, %s120
      %p124 = scmp.eq.s32.totalorder %s21, 0
      %p125 = por %p123, %p124
      %p126 = scmp.ne.s32.totalorder %s118, %s120
      %p127 = scmp.eq.s32.totalorder %s26, 1
      %p128 = por %p126, %p127
      %p129 = scmp.ne.s32.totalorder %s120, %s121
      %p130 = scmp.eq.s32.totalorder %s26, 0
      %p131 = por %p129, %p130
      %p132 = scmp.ne.s32.totalorder %s120, %s121
      %p133 = scmp.eq.s32.totalorder %s27, 1
      %p134 = por %p132, %p133
      %p136 = scmp.ne.s32.totalorder %s121, %s135
      %p137 = scmp.eq.s32.totalorder %s27, 0
      %p138 = por %p136, %p137
      %s140 = sadd.s32 %s139, 1
      %p143 = scmp.eq.s32.totalorder %s21, 1
      %p144 = scmp.ne.s32.totalorder %s139, %s141
      %p145 = scmp.eq.s32.totalorder %s21, 0
      %p146 = por %p144, %p145
      %p147 = scmp.ne.s32.totalorder %s139, %s141
      %p148 = scmp.eq.s32.totalorder %s26, 1
      %p149 = por %p147, %p148
      %p150 = scmp.ne.s32.totalorder %s141, %s142
      %p151 = scmp.eq.s32.totalorder %s26, 0
      %p152 = por %p150, %p151
      %p153 = scmp.ne.s32.totalorder %s141, %s142
      %p154 = scmp.eq.s32.totalorder %s27, 1
      %p155 = por %p153, %p154
      %p157 = scmp.ne.s32.totalorder %s142, %s156
      %p158 = scmp.eq.s32.totalorder %s27, 0
      %p159 = por %p157, %p158
      %s160 = ssub.s32 %s28, %s40
      %s161 = ssub.s32 %s29, %s36
      %s162 = sor.u32 %s160, %s161
      %p163 = scmp.eq.s32.totalorder %s162, 0
      %s165 = sadd.s32 %s164, 1
      %s166 = scalar_select %p163, %s164, %s165
      %p169 = pneg %p163
      %p170 = scmp.eq.s32.totalorder %s21, 1
      %p171 = por %p169, %p170
      %p172 = scmp.ne.s32.totalorder %s164, %s167
      %p173 = scmp.eq.s32.totalorder %s21, 0
      %p174 = por %p172, %p173
      %p175 = scmp.ne.s32.totalorder %s164, %s167
      %p176 = scmp.eq.s32.totalorder %s26, 1
      %p177 = por %p175, %p176
      %p178 = scmp.ne.s32.totalorder %s167, %s168
      %p179 = scmp.eq.s32.totalorder %s26, 0
      %p180 = por %p178, %p179
      %p181 = scmp.ne.s32.totalorder %s167, %s168
      %p182 = scmp.eq.s32.totalorder %s27, 1
      %p183 = por %p181, %p182
      %p185 = scmp.ne.s32.totalorder %s168, %s184
      %p186 = scmp.eq.s32.totalorder %s27, 0
      %p187 = por %p185, %p186
      %p188 = scmp.le.s32.totalorder 1, %s21
      %p189 = scmp.lt.s32.totalorder %s21, 3
      %p190 = pnand %p188, %p189
      %p191 = pneg %p190
      // Predicated region
      $region9: #{tpu_custom_call.1} parent=5 // pred_check
        _
      $region10: #{tpu_custom_call.1} parent=5 // pred_check_branch
        %193 = sbr.rel (%p190) target = $region12
      $region11: #{tpu_custom_call.1} parent=5 // pred_region
        %s194 = ssub.s32 %s21, 1
        // Predicated region
        $region13: #{tpu_custom_call.1} parent=11 // pred_check
          %p195 = pneg %p110
        $region14: #{tpu_custom_call.1} parent=11 // pred_check_branch
          %197 = sbr.rel (%p195) target = $region16
        $region15: #{tpu_custom_call.1} parent=11 // pred_region
          %s199 = ssub.s32 1024, 1024
          %200 = vsyncadd [#allocation6], %s199
          %s201 = sshll.u32 [#allocation7], 4
          %s202 = int_to_ptr.vmem [resolvable:$true] %s201
          %207 = dma.hbm_to_vmem [thread:$0]  %s2, 1024, %s202, [#allocation6], 64, 64, 4
        $region16: #{tpu_custom_call.1} parent=11 // pred_fallthru
          _
        // Predicated region
        $region17: #{tpu_custom_call.1} parent=11 // pred_check
          %p208 = pneg %p131
        $region18: #{tpu_custom_call.1} parent=11 // pred_check_branch
          %210 = sbr.rel (%p208) target = $region20
        $region19: #{tpu_custom_call.1} parent=11 // pred_region
          %s212 = ssub.s32 1024, 1024
          %213 = vsyncadd [#allocation9], %s212
          %s214 = sshll.u32 [#allocation8], 4
          %s215 = int_to_ptr.vmem [resolvable:$true] %s214
          %220 = dma.hbm_to_vmem [thread:$0]  %s3, 1024, %s215, [#allocation9], 64, 64, 4
        $region20: #{tpu_custom_call.1} parent=11 // pred_fallthru
          _
        // Predicated region
        $region21: #{tpu_custom_call.1} parent=11 // pred_check
          %p221 = pneg %p152
        $region22: #{tpu_custom_call.1} parent=11 // pred_check_branch
          %223 = sbr.rel (%p221) target = $region24
        $region23: #{tpu_custom_call.1} parent=11 // pred_region
          _
        $region24: #{tpu_custom_call.1} parent=11 // pred_fallthru
          _
      $region12: #{tpu_custom_call.1} parent=5 // pred_fallthru
        _
      %p224 = scmp.lt.s32.totalorder %s21, 2
      // Predicated region
      $region25: #{tpu_custom_call.1} parent=5 // pred_check
        %p225 = pneg %p224
      $region26: #{tpu_custom_call.1} parent=5 // pred_check_branch
        %227 = sbr.rel (%p225) target = $region28
      $region27: #{tpu_custom_call.1} parent=5 // pred_region
        // Predicated region
        $region29: #{tpu_custom_call.1} parent=27 // pred_check
          %p228 = pneg %p55
        $region30: #{tpu_custom_call.1} parent=27 // pred_check_branch
          %230 = sbr.rel (%p228) target = $region32
        $region31: #{tpu_custom_call.1} parent=27 // pred_region
          %s231 = sand.u32 %s45, 1
          %s232 = scalar_lea.sflag [#allocation3], %s231
          %s233 = sand.u32 %s45, 1
          %s234 = smul.addr %s233, 128
          %s235 = scalar_lea.vmem [#allocation2], %s234
          %s236 = smul.u32 16, %s29
          %s238 = ssub.s32 2048, 2048
          %239 = vsyncadd %s232, %s238
          %s240 = smul.addr %s236, 2
          %s241 = smul.addr %s28, 32
          %s242 = sadd.s32 %s240, %s241
          %s243 = smul.addr %s242, 64
          %s244 = scalar_lea.hbm %s0, %s243
          %s245 = sshll.u32 %s235, 4
          %s246 = int_to_ptr.vmem [resolvable:$true] %s245
          %251 = dma.hbm_to_vmem [thread:$0]  %s244, 2048, %s246, %s232, 64, 64, 4
        $region32: #{tpu_custom_call.1} parent=27 // pred_fallthru
          _
        // Predicated region
        $region33: #{tpu_custom_call.1} parent=27 // pred_check
          %p252 = pneg %p83
        $region34: #{tpu_custom_call.1} parent=27 // pred_check_branch
          %254 = sbr.rel (%p252) target = $region36
        $region35: #{tpu_custom_call.1} parent=27 // pred_region
          %s255 = sand.u32 %s21, 1
          %s256 = scalar_lea.sflag [#allocation6], %s255
          %s257 = sand.u32 %s73, 1
          %s258 = smul.addr %s257, 128
          %s259 = scalar_lea.vmem [#allocation5], %s258
          %s260 = smul.u32 16, %s29
          %s262 = ssub.s32 2048, 2048
          %263 = vsyncadd %s256, %s262
          %s264 = smul.addr %s260, 2
          %s265 = smul.addr %s28, 32
          %s266 = sadd.s32 %s264, %s265
          %s267 = smul.addr %s266, 64
          %s268 = scalar_lea.hbm %s1, %s267
          %s269 = sshll.u32 %s259, 4
          %s270 = int_to_ptr.vmem [resolvable:$true] %s269
          %275 = dma.hbm_to_vmem [thread:$0]  %s268, 2048, %s270, %s256, 64, 64, 4
        $region36: #{tpu_custom_call.1} parent=27 // pred_fallthru
          _
      $region28: #{tpu_custom_call.1} parent=5 // pred_fallthru
        _
      %p276 = scmp.le.s32.totalorder 1, %s21
      %p277 = scmp.lt.s32.totalorder %s21, 3
      %p278 = pnand %p276, %p277
      %p279 = pneg %p278
      // Predicated region
      $region37: #{tpu_custom_call.1} parent=5 // pred_check
        _
      $region38: #{tpu_custom_call.1} parent=5 // pred_check_branch
        %281 = sbr.rel (%p278) target = $region40
      $region39: #{tpu_custom_call.1} parent=5 // pred_region
        %s282 = ssub.s32 %s21, 1
        %s283 = sand.u32 %s48, 1
        %s284 = scalar_lea.sflag [#allocation3], %s283
        %s285 = sand.u32 %s48, 1
        %s286 = smul.addr %s285, 128
        %s287 = scalar_lea.vmem [#allocation2], %s286
        // Predicated region
        $region41: #{tpu_custom_call.1} parent=39 // pred_check
          %p288 = pneg %p61
        $region42: #{tpu_custom_call.1} parent=39 // pred_check_branch
          %290 = sbr.rel (%p288) target = $region44
        $region43: #{tpu_custom_call.1} parent=39 // pred_region
          %291 = dma.done %s284, 2048
        $region44: #{tpu_custom_call.1} parent=39 // pred_fallthru
          _
        %s292 = sand.u32 %s26, 1
        %s293 = scalar_lea.sflag [#allocation6], %s292
        %s294 = sand.u32 %s76, 1
        %s295 = smul.addr %s294, 128
        %s296 = scalar_lea.vmem [#allocation5], %s295
        // Predicated region
        $region45: #{tpu_custom_call.1} parent=39 // pred_check
          %p297 = pneg %p89
        $region46: #{tpu_custom_call.1} parent=39 // pred_check_branch
          %299 = sbr.rel (%p297) target = $region48
        $region47: #{tpu_custom_call.1} parent=39 // pred_region
          %300 = dma.done %s293, 2048
        $region48: #{tpu_custom_call.1} parent=39 // pred_fallthru
          _
        // Predicated region
        $region49: #{tpu_custom_call.1} parent=39 // pred_check
          %p301 = pneg %p110
        $region50: #{tpu_custom_call.1} parent=39 // pred_check_branch
          %303 = sbr.rel (%p301) target = $region52
        $region51: #{tpu_custom_call.1} parent=39 // pred_region
          %304 = dma.done [#allocation6], 1024
        $region52: #{tpu_custom_call.1} parent=39 // pred_fallthru
          _
        // Predicated region
        $region53: #{tpu_custom_call.1} parent=39 // pred_check
          %p305 = pneg %p131
        $region54: #{tpu_custom_call.1} parent=39 // pred_check_branch
          %307 = sbr.rel (%p305) target = $region56
        $region55: #{tpu_custom_call.1} parent=39 // pred_region
          %308 = dma.done [#allocation9], 1024
        $region56: #{tpu_custom_call.1} parent=39 // pred_fallthru
          _
        %s309 = sand.u32 %s48, 1
        %s310 = scalar_lea.sflag [#allocation3], %s309
        %s311 = sand.u32 %s48, 1
        %s312 = smul.addr %s311, 128
        %s313 = scalar_lea.vmem [#allocation2], %s312
        %p314 = pneg %p61
        %p315 = pneg %p58
        %s316 = sand.u32 %s26, 1
        %s317 = scalar_lea.sflag [#allocation6], %s316
        %s318 = sand.u32 %s76, 1
        %s319 = smul.addr %s318, 128
        %s320 = scalar_lea.vmem [#allocation5], %s319
        %p321 = pneg %p89
        %p322 = pneg %p86
        %p323 = pneg %p110
        %p324 = pneg %p107
        %p325 = pneg %p131
        %p326 = pneg %p128
        %p327 = pneg %p152
        %p328 = pneg %p149
        %p329 = pneg %p180
        %p330 = pneg %p177
        %s331 = sand.u32 %s167, 1
        %s332 = scalar_lea.sflag [#allocation4], %s331
        %s333 = sand.u32 %s167, 1
        %s334 = smul.addr %s333, 256
        %s335 = scalar_lea.vmem [#allocation10], %s334
        %s336 = smul.u32 16, %s31
        %s337 = smul.u32 16, %s31
        %s338 = smul.u32 16, %s31
        %v340 = vld [vmem:[%s287] sm:$0xf]
        %v341 = vld [vmem:[%s287 + $0x4] sm:$0xf]
        %v342 = vld [vmem:[%s287 + $0x8] sm:$0xf]
        %v343 = vld [vmem:[%s287 + $0xc] sm:$0xf]
        %v344 = vld [vmem:[%s287 + $0x10] sm:$0xf]
        %v345 = vld [vmem:[%s287 + $0x14] sm:$0xf]
        %v346 = vld [vmem:[%s287 + $0x18] sm:$0xf]
        %v347 = vld [vmem:[%s287 + $0x1c] sm:$0xf]
        %v348 = vld [vmem:[%s287 + $0x20] sm:$0xf]
        %v349 = vld [vmem:[%s287 + $0x24] sm:$0xf]
        %v350 = vld [vmem:[%s287 + $0x28] sm:$0xf]
        %v351 = vld [vmem:[%s287 + $0x2c] sm:$0xf]
        %v352 = vld [vmem:[%s287 + $0x30] sm:$0xf]
        %v353 = vld [vmem:[%s287 + $0x34] sm:$0xf]
        %v354 = vld [vmem:[%s287 + $0x38] sm:$0xf]
        %v355 = vld [vmem:[%s287 + $0x3c] sm:$0xf]
        %v356 = vld [vmem:[%s287 + $0x40] sm:$0xf]
        %v357 = vld [vmem:[%s287 + $0x44] sm:$0xf]
        %v358 = vld [vmem:[%s287 + $0x48] sm:$0xf]
        %v359 = vld [vmem:[%s287 + $0x4c] sm:$0xf]
        %v360 = vld [vmem:[%s287 + $0x50] sm:$0xf]
        %v361 = vld [vmem:[%s287 + $0x54] sm:$0xf]
        %v362 = vld [vmem:[%s287 + $0x58] sm:$0xf]
        %v363 = vld [vmem:[%s287 + $0x5c] sm:$0xf]
        %v364 = vld [vmem:[%s287 + $0x60] sm:$0xf]
        %v365 = vld [vmem:[%s287 + $0x64] sm:$0xf]
        %v366 = vld [vmem:[%s287 + $0x68] sm:$0xf]
        %v367 = vld [vmem:[%s287 + $0x6c] sm:$0xf]
        %v368 = vld [vmem:[%s287 + $0x70] sm:$0xf]
        %v369 = vld [vmem:[%s287 + $0x74] sm:$0xf]
        %v370 = vld [vmem:[%s287 + $0x78] sm:$0xf]
        %v371 = vld [vmem:[%s287 + $0x7c] sm:$0xf]
        %v372 = vld [vmem:[%s296] sm:$0xf]
        %v373 = vld [vmem:[%s296 + $0x4] sm:$0xf]
        %v374 = vld [vmem:[%s296 + $0x8] sm:$0xf]
        %v375 = vld [vmem:[%s296 + $0xc] sm:$0xf]
        %v376 = vld [vmem:[%s296 + $0x10] sm:$0xf]
        %v377 = vld [vmem:[%s296 + $0x14] sm:$0xf]
        %v378 = vld [vmem:[%s296 + $0x18] sm:$0xf]
        %v379 = vld [vmem:[%s296 + $0x1c] sm:$0xf]
        %v380 = vld [vmem:[%s296 + $0x20] sm:$0xf]
        %v381 = vld [vmem:[%s296 + $0x24] sm:$0xf]
        %v382 = vld [vmem:[%s296 + $0x28] sm:$0xf]
        %v383 = vld [vmem:[%s296 + $0x2c] sm:$0xf]
        %v384 = vld [vmem:[%s296 + $0x30] sm:$0xf]
        %v385 = vld [vmem:[%s296 + $0x34] sm:$0xf]
        %v386 = vld [vmem:[%s296 + $0x38] sm:$0xf]
        %v387 = vld [vmem:[%s296 + $0x3c] sm:$0xf]
        %v388 = vld [vmem:[%s296 + $0x40] sm:$0xf]
        %v389 = vld [vmem:[%s296 + $0x44] sm:$0xf]
        %v390 = vld [vmem:[%s296 + $0x48] sm:$0xf]
        %v391 = vld [vmem:[%s296 + $0x4c] sm:$0xf]
        %v392 = vld [vmem:[%s296 + $0x50] sm:$0xf]
        %v393 = vld [vmem:[%s296 + $0x54] sm:$0xf]
        %v394 = vld [vmem:[%s296 + $0x58] sm:$0xf]
        %v395 = vld [vmem:[%s296 + $0x5c] sm:$0xf]
        %v396 = vld [vmem:[%s296 + $0x60] sm:$0xf]
        %v397 = vld [vmem:[%s296 + $0x64] sm:$0xf]
        %v398 = vld [vmem:[%s296 + $0x68] sm:$0xf]
        %v399 = vld [vmem:[%s296 + $0x6c] sm:$0xf]
        %v400 = vld [vmem:[%s296 + $0x70] sm:$0xf]
        %v401 = vld [vmem:[%s296 + $0x74] sm:$0xf]
        %v402 = vld [vmem:[%s296 + $0x78] sm:$0xf]
        %v403 = vld [vmem:[%s296 + $0x7c] sm:$0xf]
        %v404 = vld [vmem:[#allocation7] sm:$0xf]
        %v405 = vld [vmem:[#allocation7 + $0x4] sm:$0xf]
        %v406 = vld [vmem:[#allocation7 + $0x8] sm:$0xf]
        %v407 = vld [vmem:[#allocation7 + $0xc] sm:$0xf]
        %v408 = vld [vmem:[#allocation7 + $0x10] sm:$0xf]
        %v409 = vld [vmem:[#allocation7 + $0x14] sm:$0xf]
        %v410 = vld [vmem:[#allocation7 + $0x18] sm:$0xf]
        %v411 = vld [vmem:[#allocation7 + $0x1c] sm:$0xf]
        %v412 = vld [vmem:[#allocation7 + $0x20] sm:$0xf]
        %v413 = vld [vmem:[#allocation7 + $0x24] sm:$0xf]
        %v414 = vld [vmem:[#allocation7 + $0x28] sm:$0xf]
        %v415 = vld [vmem:[#allocation7 + $0x2c] sm:$0xf]
        %v416 = vld [vmem:[#allocation7 + $0x30] sm:$0xf]
        %v417 = vld [vmem:[#allocation7 + $0x34] sm:$0xf]
        %v418 = vld [vmem:[#allocation7 + $0x38] sm:$0xf]
        %v419 = vld [vmem:[#allocation7 + $0x3c] sm:$0xf]
        %v420 = vld [vmem:[#allocation8] sm:$0xf]
        %v421 = vld [vmem:[#allocation8 + $0x4] sm:$0xf]
        %v422 = vld [vmem:[#allocation8 + $0x8] sm:$0xf]
        %v423 = vld [vmem:[#allocation8 + $0xc] sm:$0xf]
        %v424 = vld [vmem:[#allocation8 + $0x10] sm:$0xf]
        %v425 = vld [vmem:[#allocation8 + $0x14] sm:$0xf]
        %v426 = vld [vmem:[#allocation8 + $0x18] sm:$0xf]
        %v427 = vld [vmem:[#allocation8 + $0x1c] sm:$0xf]
        %v428 = vld [vmem:[#allocation8 + $0x20] sm:$0xf]
        %v429 = vld [vmem:[#allocation8 + $0x24] sm:$0xf]
        %v430 = vld [vmem:[#allocation8 + $0x28] sm:$0xf]
        %v431 = vld [vmem:[#allocation8 + $0x2c] sm:$0xf]
        %v432 = vld [vmem:[#allocation8 + $0x30] sm:$0xf]
        %v433 = vld [vmem:[#allocation8 + $0x34] sm:$0xf]
        %v434 = vld [vmem:[#allocation8 + $0x38] sm:$0xf]
        %v435 = vld [vmem:[#allocation8 + $0x3c] sm:$0xf]
        %v468 = vunpack.c.l.b16 %v372
        %v469 = vunpack.c.l.b16 %v373
        %v470 = vunpack.c.l.b16 %v374
        %v471 = vunpack.c.l.b16 %v375
        %v472 = vunpack.c.l.b16 %v376
        %v473 = vunpack.c.l.b16 %v377
        %v474 = vunpack.c.l.b16 %v378
        %v475 = vunpack.c.l.b16 %v379
        %v476 = vunpack.c.l.b16 %v380
        %v477 = vunpack.c.l.b16 %v381
        %v478 = vunpack.c.l.b16 %v382
        %v479 = vunpack.c.l.b16 %v383
        %v480 = vunpack.c.l.b16 %v384
        %v481 = vunpack.c.l.b16 %v385
        %v482 = vunpack.c.l.b16 %v386
        %v483 = vunpack.c.l.b16 %v387
        %v484 = vunpack.c.l.b16 %v388
        %v485 = vunpack.c.l.b16 %v389
        %v486 = vunpack.c.l.b16 %v390
        %v487 = vunpack.c.l.b16 %v391
        %v488 = vunpack.c.l.b16 %v392
        %v489 = vunpack.c.l.b16 %v393
        %v490 = vunpack.c.l.b16 %v394
        %v491 = vunpack.c.l.b16 %v395
        %v492 = vunpack.c.l.b16 %v396
        %v493 = vunpack.c.l.b16 %v397
        %v494 = vunpack.c.l.b16 %v398
        %v495 = vunpack.c.l.b16 %v399
        %v496 = vunpack.c.l.b16 %v400
        %v497 = vunpack.c.l.b16 %v401
        %v498 = vunpack.c.l.b16 %v402
        %v499 = vunpack.c.l.b16 %v403
        %v500 = vpack.c.b16 %v469, %v468
        %v501 = vpack.c.b16 %v471, %v470
        %v502 = vpack.c.b16 %v473, %v472
        %v503 = vpack.c.b16 %v475, %v474
        %v504 = vpack.c.b16 %v477, %v476
        %v505 = vpack.c.b16 %v479, %v478
        %v506 = vpack.c.b16 %v481, %v480
        %v507 = vpack.c.b16 %v483, %v482
        %v508 = vpack.c.b16 %v485, %v484
        %v509 = vpack.c.b16 %v487, %v486
        %v510 = vpack.c.b16 %v489, %v488
        %v511 = vpack.c.b16 %v491, %v490
        %v512 = vpack.c.b16 %v493, %v492
        %v513 = vpack.c.b16 %v495, %v494
        %v514 = vpack.c.b16 %v497, %v496
        %v515 = vpack.c.b16 %v499, %v498
        %v548 = vunpack.c.l.b16 %v420
        %v549 = vunpack.c.l.b16 %v421
        %v550 = vunpack.c.l.b16 %v422
        %v551 = vunpack.c.l.b16 %v423
        %v552 = vunpack.c.l.b16 %v424
        %v553 = vunpack.c.l.b16 %v425
        %v554 = vunpack.c.l.b16 %v426
        %v555 = vunpack.c.l.b16 %v427
        %v556 = vunpack.c.l.b16 %v428
        %v557 = vunpack.c.l.b16 %v429
        %v558 = vunpack.c.l.b16 %v430
        %v559 = vunpack.c.l.b16 %v431
        %v560 = vunpack.c.l.b16 %v432
        %v561 = vunpack.c.l.b16 %v433
        %v562 = vunpack.c.l.b16 %v434
        %v563 = vunpack.c.l.b16 %v435
        %v564 = vpack.c.b16 %v549, %v548
        %v565 = vpack.c.b16 %v551, %v550
        %v566 = vpack.c.b16 %v553, %v552
        %v567 = vpack.c.b16 %v555, %v554
        %v568 = vpack.c.b16 %v557, %v556
        %v569 = vpack.c.b16 %v559, %v558
        %v570 = vpack.c.b16 %v561, %v560
        %v571 = vpack.c.b16 %v563, %v562
        %580 = vmatprep.subr.bf16.mxu0 0
        %581 = vmatpush1.bf16.msra.mxu0 %v571
        %582 = vmatprep.subr.bf16.mxu0 0
        %583 = vmatpush1.bf16.msra.mxu0 %v570
        %584 = vmatprep.subr.bf16.mxu0 0
        %585 = vmatpush1.bf16.msra.mxu0 %v569
        %586 = vmatprep.subr.bf16.mxu0 0
        %587 = vmatpush1.bf16.msra.mxu0 %v568
        %588 = vmatprep.subr.bf16.mxu0 0
        %589 = vmatpush1.bf16.msra.mxu0 %v567
        %590 = vmatprep.subr.bf16.mxu0 0
        %591 = vmatpush1.bf16.msra.mxu0 %v566
        %592 = vmatprep.subr.bf16.mxu0 0
        %593 = vmatpush1.bf16.msra.mxu0 %v565
        %594 = vmatprep.subr.bf16.mxu0 0
        %595 = vmatpush1.bf16.msra.mxu0 %v564
        %596 = vmatprep.subr.bf16.mxu0 0
        %597 = vmatpush2.bf16.msra.mxu0 0
        %598 = vmatprep.subr.bf16.mxu0 0
        %599 = vmatpush2.bf16.msra.mxu0 0
        %600 = vmatprep.subr.bf16.mxu0 0
        %601 = vmatpush2.bf16.msra.mxu0 0
        %602 = vmatprep.subr.bf16.mxu0 0
        %603 = vmatpush2.bf16.msra.mxu0 0
        %604 = vmatprep.subr.bf16.mxu0 0
        %605 = vmatpush2.bf16.msra.mxu0 0
        %606 = vmatprep.subr.bf16.mxu0 0
        %607 = vmatpush2.bf16.msra.mxu0 0
        %608 = vmatprep.subr.bf16.mxu0 0
        %609 = vmatpush2.bf16.msra.mxu0 0
        %610 = vmatprep.subr.bf16.mxu0 0
        %611 = vmatpush2.bf16.msra.mxu0 0
        %612 = vmatprep.mubr.bf16.mxu0 0
        %613 = vmatmul.mubr.bf16.gmra.mxu0 %v500
        %v614 = vpop.f32.mrf.mxu0
        %v615 = vadd.f32 0.0, %v614
        %v616 = vpop.f32.mrf.mxu0
        %v617 = vpop.f32.mrf.mxu0
        %v618 = vadd.f32 0.0, %v617
        %v619 = vpop.f32.mrf.mxu0
        %620 = vmatprep.mubr.bf16.mxu0 0
        %621 = vmatmul.mubr.bf16.gmra.mxu0 %v501
        %v622 = vpop.f32.mrf.mxu0
        %v623 = vadd.f32 0.0, %v622
        %v624 = vpop.f32.mrf.mxu0
        %v625 = vpop.f32.mrf.mxu0
        %v626 = vadd.f32 0.0, %v625
        %v627 = vpop.f32.mrf.mxu0
        %628 = vmatprep.mubr.bf16.mxu0 0
        %629 = vmatmul.mubr.bf16.gmra.mxu0 %v502
        %v630 = vpop.f32.mrf.mxu0
        %v631 = vadd.f32 0.0, %v630
        %v632 = vpop.f32.mrf.mxu0
        %v633 = vpop.f32.mrf.mxu0
        %v634 = vadd.f32 0.0, %v633
        %v635 = vpop.f32.mrf.mxu0
        %636 = vmatprep.mubr.bf16.mxu0 0
        %637 = vmatmul.mubr.bf16.gmra.mxu0 %v503
        %v638 = vpop.f32.mrf.mxu0
        %v639 = vadd.f32 0.0, %v638
        %v640 = vpop.f32.mrf.mxu0
        %v641 = vpop.f32.mrf.mxu0
        %v642 = vadd.f32 0.0, %v641
        %v643 = vpop.f32.mrf.mxu0
        %644 = vmatprep.mubr.bf16.mxu0 0
        %645 = vmatmul.mubr.bf16.gmra.mxu0 %v504
        %v646 = vpop.f32.mrf.mxu0
        %v647 = vadd.f32 0.0, %v646
        %v648 = vpop.f32.mrf.mxu0
        %v649 = vpop.f32.mrf.mxu0
        %v650 = vadd.f32 0.0, %v649
        %v651 = vpop.f32.mrf.mxu0
        %652 = vmatprep.mubr.bf16.mxu0 0
        %653 = vmatmul.mubr.bf16.gmra.mxu0 %v505
        %v654 = vpop.f32.mrf.mxu0
        %v655 = vadd.f32 0.0, %v654
        %v656 = vpop.f32.mrf.mxu0
        %v657 = vpop.f32.mrf.mxu0
        %v658 = vadd.f32 0.0, %v657
        %v659 = vpop.f32.mrf.mxu0
        %660 = vmatprep.mubr.bf16.mxu0 0
        %661 = vmatmul.mubr.bf16.gmra.mxu0 %v506
        %v662 = vpop.f32.mrf.mxu0
        %v663 = vadd.f32 0.0, %v662
        %v664 = vpop.f32.mrf.mxu0
        %v665 = vpop.f32.mrf.mxu0
        %v666 = vadd.f32 0.0, %v665
        %v667 = vpop.f32.mrf.mxu0
        %668 = vmatprep.mubr.bf16.mxu0 0
        %669 = vmatmul.mubr.bf16.gmra.mxu0 %v507
        %v670 = vpop.f32.mrf.mxu0
        %v671 = vadd.f32 0.0, %v670
        %v672 = vpop.f32.mrf.mxu0
        %v673 = vpop.f32.mrf.mxu0
        %v674 = vadd.f32 0.0, %v673
        %v675 = vpop.f32.mrf.mxu0
        %676 = vmatprep.mubr.bf16.mxu0 0
        %677 = vmatmul.mubr.bf16.gmra.mxu0 %v508
        %v678 = vpop.f32.mrf.mxu0
        %v679 = vadd.f32 0.0, %v678
        %v680 = vpop.f32.mrf.mxu0
        %v681 = vpop.f32.mrf.mxu0
        %v682 = vadd.f32 0.0, %v681
        %v683 = vpop.f32.mrf.mxu0
        %684 = vmatprep.mubr.bf16.mxu0 0
        %685 = vmatmul.mubr.bf16.gmra.mxu0 %v509
        %v686 = vpop.f32.mrf.mxu0
        %v687 = vadd.f32 0.0, %v686
        %v688 = vpop.f32.mrf.mxu0
        %v689 = vpop.f32.mrf.mxu0
        %v690 = vadd.f32 0.0, %v689
        %v691 = vpop.f32.mrf.mxu0
        %692 = vmatprep.mubr.bf16.mxu0 0
        %693 = vmatmul.mubr.bf16.gmra.mxu0 %v510
        %v694 = vpop.f32.mrf.mxu0
        %v695 = vadd.f32 0.0, %v694
        %v696 = vpop.f32.mrf.mxu0
        %v697 = vpop.f32.mrf.mxu0
        %v698 = vadd.f32 0.0, %v697
        %v699 = vpop.f32.mrf.mxu0
        %700 = vmatprep.mubr.bf16.mxu0 0
        %701 = vmatmul.mubr.bf16.gmra.mxu0 %v511
        %v702 = vpop.f32.mrf.mxu0
        %v703 = vadd.f32 0.0, %v702
        %v704 = vpop.f32.mrf.mxu0
        %v705 = vpop.f32.mrf.mxu0
        %v706 = vadd.f32 0.0, %v705
        %v707 = vpop.f32.mrf.mxu0
        %708 = vmatprep.mubr.bf16.mxu0 0
        %709 = vmatmul.mubr.bf16.gmra.mxu0 %v512
        %v710 = vpop.f32.mrf.mxu0
        %v711 = vadd.f32 0.0, %v710
        %v712 = vpop.f32.mrf.mxu0
        %v713 = vpop.f32.mrf.mxu0
        %v714 = vadd.f32 0.0, %v713
        %v715 = vpop.f32.mrf.mxu0
        %716 = vmatprep.mubr.bf16.mxu0 0
        %717 = vmatmul.mubr.bf16.gmra.mxu0 %v513
        %v718 = vpop.f32.mrf.mxu0
        %v719 = vadd.f32 0.0, %v718
        %v720 = vpop.f32.mrf.mxu0
        %v721 = vpop.f32.mrf.mxu0
        %v722 = vadd.f32 0.0, %v721
        %v723 = vpop.f32.mrf.mxu0
        %724 = vmatprep.mubr.bf16.mxu0 0
        %725 = vmatmul.mubr.bf16.gmra.mxu0 %v514
        %v726 = vpop.f32.mrf.mxu0
        %v727 = vadd.f32 0.0, %v726
        %v728 = vpop.f32.mrf.mxu0
        %v729 = vpop.f32.mrf.mxu0
        %v730 = vadd.f32 0.0, %v729
        %v731 = vpop.f32.mrf.mxu0
        %732 = vmatprep.mubr.bf16.mxu0 0
        %733 = vmatmul.mubr.bf16.gmra.mxu0 %v515
        %v734 = vpop.f32.mrf.mxu0
        %v735 = vadd.f32 0.0, %v734
        %v736 = vpop.f32.mrf.mxu0
        %v737 = vpop.f32.mrf.mxu0
        %v738 = vadd.f32 0.0, %v737
        %v739 = vpop.f32.mrf.mxu0
        %740 = vdwg.mxu0
        %v773 = vunpack.c.l.b16 %v340
        %v774 = vunpack.c.l.b16 %v341
        %v775 = vunpack.c.l.b16 %v342
        %v776 = vunpack.c.l.b16 %v343
        %v777 = vunpack.c.l.b16 %v344
        %v778 = vunpack.c.l.b16 %v345
        %v779 = vunpack.c.l.b16 %v346
        %v780 = vunpack.c.l.b16 %v347
        %v781 = vunpack.c.l.b16 %v348
        %v782 = vunpack.c.l.b16 %v349
        %v783 = vunpack.c.l.b16 %v350
        %v784 = vunpack.c.l.b16 %v351
        %v785 = vunpack.c.l.b16 %v352
        %v786 = vunpack.c.l.b16 %v353
        %v787 = vunpack.c.l.b16 %v354
        %v788 = vunpack.c.l.b16 %v355
        %v789 = vunpack.c.l.b16 %v356
        %v790 = vunpack.c.l.b16 %v357
        %v791 = vunpack.c.l.b16 %v358
        %v792 = vunpack.c.l.b16 %v359
        %v793 = vunpack.c.l.b16 %v360
        %v794 = vunpack.c.l.b16 %v361
        %v795 = vunpack.c.l.b16 %v362
        %v796 = vunpack.c.l.b16 %v363
        %v797 = vunpack.c.l.b16 %v364
        %v798 = vunpack.c.l.b16 %v365
        %v799 = vunpack.c.l.b16 %v366
        %v800 = vunpack.c.l.b16 %v367
        %v801 = vunpack.c.l.b16 %v368
        %v802 = vunpack.c.l.b16 %v369
        %v803 = vunpack.c.l.b16 %v370
        %v804 = vunpack.c.l.b16 %v371
        %v805 = vpack.c.b16 %v774, %v773
        %v806 = vpack.c.b16 %v776, %v775
        %v807 = vpack.c.b16 %v778, %v777
        %v808 = vpack.c.b16 %v780, %v779
        %v809 = vpack.c.b16 %v782, %v781
        %v810 = vpack.c.b16 %v784, %v783
        %v811 = vpack.c.b16 %v786, %v785
        %v812 = vpack.c.b16 %v788, %v787
        %v813 = vpack.c.b16 %v790, %v789
        %v814 = vpack.c.b16 %v792, %v791
        %v815 = vpack.c.b16 %v794, %v793
        %v816 = vpack.c.b16 %v796, %v795
        %v817 = vpack.c.b16 %v798, %v797
        %v818 = vpack.c.b16 %v800, %v799
        %v819 = vpack.c.b16 %v802, %v801
        %v820 = vpack.c.b16 %v804, %v803
        %v853 = vunpack.c.l.b16 %v404
        %v854 = vunpack.c.l.b16 %v405
        %v855 = vunpack.c.l.b16 %v406
        %v856 = vunpack.c.l.b16 %v407
        %v857 = vunpack.c.l.b16 %v408
        %v858 = vunpack.c.l.b16 %v409
        %v859 = vunpack.c.l.b16 %v410
        %v860 = vunpack.c.l.b16 %v411
        %v861 = vunpack.c.l.b16 %v412
        %v862 = vunpack.c.l.b16 %v413
        %v863 = vunpack.c.l.b16 %v414
        %v864 = vunpack.c.l.b16 %v415
        %v865 = vunpack.c.l.b16 %v416
        %v866 = vunpack.c.l.b16 %v417
        %v867 = vunpack.c.l.b16 %v418
        %v868 = vunpack.c.l.b16 %v419
        %v869 = vpack.c.b16 %v854, %v853
        %v870 = vpack.c.b16 %v856, %v855
        %v871 = vpack.c.b16 %v858, %v857
        %v872 = vpack.c.b16 %v860, %v859
        %v873 = vpack.c.b16 %v862, %v861
        %v874 = vpack.c.b16 %v864, %v863
        %v875 = vpack.c.b16 %v866, %v865
        %v876 = vpack.c.b16 %v868, %v867
        %885 = vmatprep.subr.bf16.mxu0 0
        %886 = vmatpush1.bf16.msra.mxu0 %v876
        %887 = vmatprep.subr.bf16.mxu0 0
        %888 = vmatpush1.bf16.msra.mxu0 %v875
        %889 = vmatprep.subr.bf16.mxu0 0
        %890 = vmatpush1.bf16.msra.mxu0 %v874
        %891 = vmatprep.subr.bf16.mxu0 0
        %892 = vmatpush1.bf16.msra.mxu0 %v873
        %893 = vmatprep.subr.bf16.mxu0 0
        %894 = vmatpush1.bf16.msra.mxu0 %v872
        %895 = vmatprep.subr.bf16.mxu0 0
        %896 = vmatpush1.bf16.msra.mxu0 %v871
        %897 = vmatprep.subr.bf16.mxu0 0
        %898 = vmatpush1.bf16.msra.mxu0 %v870
        %899 = vmatprep.subr.bf16.mxu0 0
        %900 = vmatpush1.bf16.msra.mxu0 %v869
        %901 = vmatprep.subr.bf16.mxu0 0
        %902 = vmatpush2.bf16.msra.mxu0 0
        %903 = vmatprep.subr.bf16.mxu0 0
        %904 = vmatpush2.bf16.msra.mxu0 0
        %905 = vmatprep.subr.bf16.mxu0 0
        %906 = vmatpush2.bf16.msra.mxu0 0
        %907 = vmatprep.subr.bf16.mxu0 0
        %908 = vmatpush2.bf16.msra.mxu0 0
        %909 = vmatprep.subr.bf16.mxu0 0
        %910 = vmatpush2.bf16.msra.mxu0 0
        %911 = vmatprep.subr.bf16.mxu0 0
        %912 = vmatpush2.bf16.msra.mxu0 0
        %913 = vmatprep.subr.bf16.mxu0 0
        %914 = vmatpush2.bf16.msra.mxu0 0
        %915 = vmatprep.subr.bf16.mxu0 0
        %916 = vmatpush2.bf16.msra.mxu0 0
        %917 = vmatprep.mubr.bf16.mxu0 0
        %918 = vmatmul.mubr.bf16.gmra.mxu0 %v805
        %v919 = vpop.f32.mrf.mxu0
        %v920 = vadd.f32 %v615, %v919
        %v921 = vpop.f32.mrf.mxu0
        %v922 = vpop.f32.mrf.mxu0
        %v923 = vadd.f32 %v618, %v922
        %v924 = vpop.f32.mrf.mxu0
        %925 = vmatprep.mubr.bf16.mxu0 0
        %926 = vmatmul.mubr.bf16.gmra.mxu0 %v806
        %v927 = vpop.f32.mrf.mxu0
        %v928 = vadd.f32 %v623, %v927
        %v929 = vpop.f32.mrf.mxu0
        %v930 = vpop.f32.mrf.mxu0
        %v931 = vadd.f32 %v626, %v930
        %v932 = vpop.f32.mrf.mxu0
        %933 = vmatprep.mubr.bf16.mxu0 0
        %934 = vmatmul.mubr.bf16.gmra.mxu0 %v807
        %v935 = vpop.f32.mrf.mxu0
        %v936 = vadd.f32 %v631, %v935
        %v937 = vpop.f32.mrf.mxu0
        %v938 = vpop.f32.mrf.mxu0
        %v939 = vadd.f32 %v634, %v938
        %v940 = vpop.f32.mrf.mxu0
        %941 = vmatprep.mubr.bf16.mxu0 0
        %942 = vmatmul.mubr.bf16.gmra.mxu0 %v808
        %v943 = vpop.f32.mrf.mxu0
        %v944 = vadd.f32 %v639, %v943
        %v945 = vpop.f32.mrf.mxu0
        %v946 = vpop.f32.mrf.mxu0
        %v947 = vadd.f32 %v642, %v946
        %v948 = vpop.f32.mrf.mxu0
        %949 = vmatprep.mubr.bf16.mxu0 0
        %950 = vmatmul.mubr.bf16.gmra.mxu0 %v809
        %v951 = vpop.f32.mrf.mxu0
        %v952 = vadd.f32 %v647, %v951
        %v953 = vpop.f32.mrf.mxu0
        %v954 = vpop.f32.mrf.mxu0
        %v955 = vadd.f32 %v650, %v954
        %v956 = vpop.f32.mrf.mxu0
        %957 = vmatprep.mubr.bf16.mxu0 0
        %958 = vmatmul.mubr.bf16.gmra.mxu0 %v810
        %v959 = vpop.f32.mrf.mxu0
        %v960 = vadd.f32 %v655, %v959
        %v961 = vpop.f32.mrf.mxu0
        %v962 = vpop.f32.mrf.mxu0
        %v963 = vadd.f32 %v658, %v962
        %v964 = vpop.f32.mrf.mxu0
        %965 = vmatprep.mubr.bf16.mxu0 0
        %966 = vmatmul.mubr.bf16.gmra.mxu0 %v811
        %v967 = vpop.f32.mrf.mxu0
        %v968 = vadd.f32 %v663, %v967
        %v969 = vpop.f32.mrf.mxu0
        %v970 = vpop.f32.mrf.mxu0
        %v971 = vadd.f32 %v666, %v970
        %v972 = vpop.f32.mrf.mxu0
        %973 = vmatprep.mubr.bf16.mxu0 0
        %974 = vmatmul.mubr.bf16.gmra.mxu0 %v812
        %v975 = vpop.f32.mrf.mxu0
        %v976 = vadd.f32 %v671, %v975
        %v977 = vpop.f32.mrf.mxu0
        %v978 = vpop.f32.mrf.mxu0
        %v979 = vadd.f32 %v674, %v978
        %v980 = vpop.f32.mrf.mxu0
        %981 = vmatprep.mubr.bf16.mxu0 0
        %982 = vmatmul.mubr.bf16.gmra.mxu0 %v813
        %v983 = vpop.f32.mrf.mxu0
        %v984 = vadd.f32 %v679, %v983
        %v985 = vpop.f32.mrf.mxu0
        %v986 = vpop.f32.mrf.mxu0
        %v987 = vadd.f32 %v682, %v986
        %v988 = vpop.f32.mrf.mxu0
        %989 = vmatprep.mubr.bf16.mxu0 0
        %990 = vmatmul.mubr.bf16.gmra.mxu0 %v814
        %v991 = vpop.f32.mrf.mxu0
        %v992 = vadd.f32 %v687, %v991
        %v993 = vpop.f32.mrf.mxu0
        %v994 = vpop.f32.mrf.mxu0
        %v995 = vadd.f32 %v690, %v994
        %v996 = vpop.f32.mrf.mxu0
        %997 = vmatprep.mubr.bf16.mxu0 0
        %998 = vmatmul.mubr.bf16.gmra.mxu0 %v815
        %v999 = vpop.f32.mrf.mxu0
        %v1000 = vadd.f32 %v695, %v999
        %v1001 = vpop.f32.mrf.mxu0
        %v1002 = vpop.f32.mrf.mxu0
        %v1003 = vadd.f32 %v698, %v1002
        %v1004 = vpop.f32.mrf.mxu0
        %1005 = vmatprep.mubr.bf16.mxu0 0
        %1006 = vmatmul.mubr.bf16.gmra.mxu0 %v816
        %v1007 = vpop.f32.mrf.mxu0
        %v1008 = vadd.f32 %v703, %v1007
        %v1009 = vpop.f32.mrf.mxu0
        %v1010 = vpop.f32.mrf.mxu0
        %v1011 = vadd.f32 %v706, %v1010
        %v1012 = vpop.f32.mrf.mxu0
        %1013 = vmatprep.mubr.bf16.mxu0 0
        %1014 = vmatmul.mubr.bf16.gmra.mxu0 %v817
        %v1015 = vpop.f32.mrf.mxu0
        %v1016 = vadd.f32 %v711, %v1015
        %v1017 = vpop.f32.mrf.mxu0
        %v1018 = vpop.f32.mrf.mxu0
        %v1019 = vadd.f32 %v714, %v1018
        %v1020 = vpop.f32.mrf.mxu0
        %1021 = vmatprep.mubr.bf16.mxu0 0
        %1022 = vmatmul.mubr.bf16.gmra.mxu0 %v818
        %v1023 = vpop.f32.mrf.mxu0
        %v1024 = vadd.f32 %v719, %v1023
        %v1025 = vpop.f32.mrf.mxu0
        %v1026 = vpop.f32.mrf.mxu0
        %v1027 = vadd.f32 %v722, %v1026
        %v1028 = vpop.f32.mrf.mxu0
        %1029 = vmatprep.mubr.bf16.mxu0 0
        %1030 = vmatmul.mubr.bf16.gmra.mxu0 %v819
        %v1031 = vpop.f32.mrf.mxu0
        %v1032 = vadd.f32 %v727, %v1031
        %v1033 = vpop.f32.mrf.mxu0
        %v1034 = vpop.f32.mrf.mxu0
        %v1035 = vadd.f32 %v730, %v1034
        %v1036 = vpop.f32.mrf.mxu0
        %1037 = vmatprep.mubr.bf16.mxu0 0
        %1038 = vmatmul.mubr.bf16.gmra.mxu0 %v820
        %v1039 = vpop.f32.mrf.mxu0
        %v1040 = vadd.f32 %v735, %v1039
        %v1041 = vpop.f32.mrf.mxu0
        %v1042 = vpop.f32.mrf.mxu0
        %v1043 = vadd.f32 %v738, %v1042
        %v1044 = vpop.f32.mrf.mxu0
        %1045 = vdwg.mxu0
        %v1046 = vld [vmem:[%s4] sm:$0x1]
        %v1048 = vlaneseq
        %v1049 = vshrl.u32 %v1048, 7
        %v1050 = vsub.s32 0, %v1049
        %v1051 = vrot.slane %v1046, %v1050
        %v1053 = vadd.f32 %v920, %v1051
        %v1054 = vadd.f32 %v923, %v1051
        %v1055 = vadd.f32 %v928, %v1051
        %v1056 = vadd.f32 %v931, %v1051
        %v1057 = vadd.f32 %v936, %v1051
        %v1058 = vadd.f32 %v939, %v1051
        %v1059 = vadd.f32 %v944, %v1051
        %v1060 = vadd.f32 %v947, %v1051
        %v1061 = vadd.f32 %v952, %v1051
        %v1062 = vadd.f32 %v955, %v1051
        %v1063 = vadd.f32 %v960, %v1051
        %v1064 = vadd.f32 %v963, %v1051
        %v1065 = vadd.f32 %v968, %v1051
        %v1066 = vadd.f32 %v971, %v1051
        %v1067 = vadd.f32 %v976, %v1051
        %v1068 = vadd.f32 %v979, %v1051
        %v1069 = vadd.f32 %v984, %v1051
        %v1070 = vadd.f32 %v987, %v1051
        %v1071 = vadd.f32 %v992, %v1051
        %v1072 = vadd.f32 %v995, %v1051
        %v1073 = vadd.f32 %v1000, %v1051
        %v1074 = vadd.f32 %v1003, %v1051
        %v1075 = vadd.f32 %v1008, %v1051
        %v1076 = vadd.f32 %v1011, %v1051
        %v1077 = vadd.f32 %v1016, %v1051
        %v1078 = vadd.f32 %v1019, %v1051
        %v1079 = vadd.f32 %v1024, %v1051
        %v1080 = vadd.f32 %v1027, %v1051
        %v1081 = vadd.f32 %v1032, %v1051
        %v1082 = vadd.f32 %v1035, %v1051
        %v1083 = vadd.f32 %v1040, %v1051
        %v1084 = vadd.f32 %v1043, %v1051
        %v1085 = vmax.f32 %v1053, 0.0
        %v1086 = vmax.f32 %v1054, 0.0
        %v1087 = vmax.f32 %v1055, 0.0
        %v1088 = vmax.f32 %v1056, 0.0
        %v1089 = vmax.f32 %v1057, 0.0
        %v1090 = vmax.f32 %v1058, 0.0
        %v1091 = vmax.f32 %v1059, 0.0
        %v1092 = vmax.f32 %v1060, 0.0
        %v1093 = vmax.f32 %v1061, 0.0
        %v1094 = vmax.f32 %v1062, 0.0
        %v1095 = vmax.f32 %v1063, 0.0
        %v1096 = vmax.f32 %v1064, 0.0
        %v1097 = vmax.f32 %v1065, 0.0
        %v1098 = vmax.f32 %v1066, 0.0
        %v1099 = vmax.f32 %v1067, 0.0
        %v1100 = vmax.f32 %v1068, 0.0
        %v1101 = vmax.f32 %v1069, 0.0
        %v1102 = vmax.f32 %v1070, 0.0
        %v1103 = vmax.f32 %v1071, 0.0
        %v1104 = vmax.f32 %v1072, 0.0
        %v1105 = vmax.f32 %v1073, 0.0
        %v1106 = vmax.f32 %v1074, 0.0
        %v1107 = vmax.f32 %v1075, 0.0
        %v1108 = vmax.f32 %v1076, 0.0
        %v1109 = vmax.f32 %v1077, 0.0
        %v1110 = vmax.f32 %v1078, 0.0
        %v1111 = vmax.f32 %v1079, 0.0
        %v1112 = vmax.f32 %v1080, 0.0
        %v1113 = vmax.f32 %v1081, 0.0
        %v1114 = vmax.f32 %v1082, 0.0
        %v1115 = vmax.f32 %v1083, 0.0
        %v1116 = vmax.f32 %v1084, 0.0
        %1117 = vst [vmem:[%s335] sm:$0xff] %v1085
        %1118 = vst [vmem:[%s335 + $0x8] sm:$0xff] %v1086
        %1119 = vst [vmem:[%s335 + $0x10] sm:$0xff] %v1087
        %1120 = vst [vmem:[%s335 + $0x18] sm:$0xff] %v1088
        %1121 = vst [vmem:[%s335 + $0x20] sm:$0xff] %v1089
        %1122 = vst [vmem:[%s335 + $0x28] sm:$0xff] %v1090
        %1123 = vst [vmem:[%s335 + $0x30] sm:$0xff] %v1091
        %1124 = vst [vmem:[%s335 + $0x38] sm:$0xff] %v1092
        %1125 = vst [vmem:[%s335 + $0x40] sm:$0xff] %v1093
        %1126 = vst [vmem:[%s335 + $0x48] sm:$0xff] %v1094
        %1127 = vst [vmem:[%s335 + $0x50] sm:$0xff] %v1095
        %1128 = vst [vmem:[%s335 + $0x58] sm:$0xff] %v1096
        %1129 = vst [vmem:[%s335 + $0x60] sm:$0xff] %v1097
        %1130 = vst [vmem:[%s335 + $0x68] sm:$0xff] %v1098
        %1131 = vst [vmem:[%s335 + $0x70] sm:$0xff] %v1099
        %1132 = vst [vmem:[%s335 + $0x78] sm:$0xff] %v1100
        %1133 = vst [vmem:[%s335 + $0x80] sm:$0xff] %v1101
        %1134 = vst [vmem:[%s335 + $0x88] sm:$0xff] %v1102
        %1135 = vst [vmem:[%s335 + $0x90] sm:$0xff] %v1103
        %1136 = vst [vmem:[%s335 + $0x98] sm:$0xff] %v1104
        %1137 = vst [vmem:[%s335 + $0xa0] sm:$0xff] %v1105
        %1138 = vst [vmem:[%s335 + $0xa8] sm:$0xff] %v1106
        %1139 = vst [vmem:[%s335 + $0xb0] sm:$0xff] %v1107
        %1140 = vst [vmem:[%s335 + $0xb8] sm:$0xff] %v1108
        %1141 = vst [vmem:[%s335 + $0xc0] sm:$0xff] %v1109
        %1142 = vst [vmem:[%s335 + $0xc8] sm:$0xff] %v1110
        %1143 = vst [vmem:[%s335 + $0xd0] sm:$0xff] %v1111
        %1144 = vst [vmem:[%s335 + $0xd8] sm:$0xff] %v1112
        %1145 = vst [vmem:[%s335 + $0xe0] sm:$0xff] %v1113
        %1146 = vst [vmem:[%s335 + $0xe8] sm:$0xff] %v1114
        %1147 = vst [vmem:[%s335 + $0xf0] sm:$0xff] %v1115
        %1148 = vst [vmem:[%s335 + $0xf8] sm:$0xff] %v1116
        %s1149 = sand.u32 %s167, 1
        %s1150 = scalar_lea.sflag [#allocation4], %s1149
        %s1151 = sand.u32 %s167, 1
        %s1152 = smul.addr %s1151, 256
        %s1153 = scalar_lea.vmem [#allocation10], %s1152
        // Predicated region
        $region57: #{tpu_custom_call.1} parent=39 // pred_check
          %p1154 = pneg %p177
        $region58: #{tpu_custom_call.1} parent=39 // pred_check_branch
          %1156 = sbr.rel (%p1154) target = $region60
        $region59: #{tpu_custom_call.1} parent=39 // pred_region
          %s1157 = smul.u32 16, %s31
          %s1159 = ssub.s32 4096, 4096
          %1160 = vsyncadd %s1150, %s1159
          %s1161 = smul.addr %s1157, 2
          %s1162 = smul.addr %s30, 32
          %s1163 = sadd.s32 %s1161, %s1162
          %s1164 = smul.addr %s1163, 128
          %s1165 = scalar_lea.hbm %s5, %s1164
          %s1166 = sshll.u32 %s1153, 4
          %s1167 = int_to_ptr.vmem [resolvable:$true] %s1166
          %1172 = dma.vmem_to_hbm [thread:$0]  %s1167, 4096, %s1165, %s1150, 128, 128, 8
        $region60: #{tpu_custom_call.1} parent=39 // pred_fallthru
          _
      $region40: #{tpu_custom_call.1} parent=5 // pred_fallthru
        _
      %p1173 = scmp.le.s32.totalorder 2, %s21
      // Predicated region
      $region61: #{tpu_custom_call.1} parent=5 // pred_check
        %p1174 = pneg %p1173
      $region62: #{tpu_custom_call.1} parent=5 // pred_check_branch
        %1176 = sbr.rel (%p1174) target = $region64
      $region63: #{tpu_custom_call.1} parent=5 // pred_region
        %s1177 = ssub.s32 %s21, 2
        // Predicated region
        $region65: #{tpu_custom_call.1} parent=63 // pred_check
          %p1178 = pneg %p183
        $region66: #{tpu_custom_call.1} parent=63 // pred_check_branch
          %1180 = sbr.rel (%p1178) target = $region68
        $region67: #{tpu_custom_call.1} parent=63 // pred_region
          %s1181 = sand.u32 %s168, 1
          %s1182 = scalar_lea.sflag [#allocation4], %s1181
          %s1183 = sand.u32 %s168, 1
          %s1184 = smul.addr %s1183, 256
          %s1185 = scalar_lea.vmem [#allocation10], %s1184
          %1186 = dma.done %s1182, 4096
        $region68: #{tpu_custom_call.1} parent=63 // pred_fallthru
          _
      $region64: #{tpu_custom_call.1} parent=5 // pred_fallthru
        _
    $region6: #{tpu_custom_call.1} parent=1 // loop_footer
      %s25 = sadd.s32 1, %s21
    $region7: #{tpu_custom_call.1} parent=1 // loop_footer_branch
      %20 = sbr.rel target = $region3
    $region8: #{tpu_custom_call.1} parent=1 // loop_exit
      _
    %1187 = vsyncpa [#allocation3], 1
    %s1188 = scalar_lea.sflag [#allocation3], 1
    %1189 = vsyncpa %s1188, 1
    %1190 = vsyncpa [#allocation6], 1
    %s1191 = scalar_lea.sflag [#allocation6], 1
    %1192 = vsyncpa %s1191, 1
    %1193 = vsyncpa [#allocation9], 1
    %1194 = vsyncpa [#allocation4], 1
    %s1195 = scalar_lea.sflag [#allocation4], 1
    %1196 = vsyncpa %s1195, 1

</llo_original>
